<compile_context>
chip_gen: v7x
topology: tpu7x:2x2x1
jax: 0.10.0
libtpu: 0.0.40
codegen_flags: <defaults>
</compile_context>

<pallas_src>
import jax
import jax.numpy as jnp
from jax.experimental import pallas as pl
from jax.experimental.pallas import tpu as pltpu


_MIN_GRID_BLOCKS = 8  # >= 2-4 blocks per TensorCore so v7x's second core isn't idle.


def _mul_kernel(x_ref, m_ref, o_ref):
    """Single native-dtype multiply; the mask block broadcasts over the time axis.

    batch_first=True : x (tile_b, tile_t, tile_h) * m (tile_b, 1, tile_h)
    batch_first=False: x (tile_t, B, H) * m (1, B, H)   or   x (tile_t, C) * m (1, C)
    """
    o_ref[...] = x_ref[...] * m_ref[...]


def _target_block_bytes():
    """Per-block DMA target: ~4 MiB on v6e/v7x, ~2 MiB on v5e (lower HBM BW, nothing to gain
    from huge tiles there).  Falls back to 4 MiB — safe because vmem_limit_bytes is always
    passed explicitly, so the default scoped-VMEM limit can't OOM."""
    try:
        info = pltpu.get_tpu_info()
        name = str(getattr(info, "chip_version", "") or getattr(info, "name", "")).lower()
        if "v5" in name or "5e" in name or "5p" in name:
            return 2 * 1024 * 1024
        return 4 * 1024 * 1024
    except Exception:
        return 4 * 1024 * 1024


def _sublane_multiple(itemsize):
    """Sublane packing multiple: 8 for f32, 16 for bf16, 32 for int8/fp8."""
    return max(8, 32 // max(1, itemsize))


def _floor_to_multiple(v, m):
    return max(m, (v // m) * m)


def _cap_tile_for_blocks(tile, total, multiple, min_blocks):
    """Shrink `tile` (kept a multiple of `multiple`) until the axis yields >= min_blocks
    blocks, or the tile can't shrink further.  Keeps v7x's second TensorCore busy."""
    if min_blocks <= 1:
        return tile
    while tile > multiple and pl.cdiv(total, tile) < min_blocks:
        new = max(multiple, ((tile // 2) // multiple) * multiple)
        if new == tile:
            break
        tile = new
    return tile


def variational_dropout(x, *, dropout=0.0, batch_first=False, training=True, seed=0,
                        key=None, donate=False):
    """JAX/Pallas equivalent of VariationalDropout.forward.

    batch_first=True : x is (B, T, H); one mask per (batch, hidden), shared across T.
    batch_first=False: x is (T, B, H); one mask per (batch, hidden), shared across T
                       (the intended variational-dropout semantics; PyTorch's literal
                       (1, T, H) broadcast is only well-formed when T == B).
    """
    if (not training) or dropout <= 0.0:
        return x
    if dropout >= 1.0:
        # Everything is dropped. (PyTorch's masked_fill / (1 - 1.0) would yield NaN/inf.)
        return jnp.zeros_like(x)

    keep_prob = 1.0 - float(dropout)
    if key is None:
        key = jax.random.PRNGKey(seed)

    itemsize = jnp.dtype(x.dtype).itemsize
    sub_mult = _sublane_multiple(itemsize)
    target = _target_block_bytes()
    reshape_out = None

    if batch_first:
        B, T, H = x.shape
        keep = jax.random.bernoulli(key, p=keep_prob, shape=(B, 1, H))
        mask = jnp.where(keep, 1.0 / keep_prob, 0.0).astype(x.dtype)

        # Lane (H) tiling: only when a minimal (sub_mult x H) slab would blow the target
        # and H is 128-aligned (a partial lane block would force masked vst).
        if H % 128 == 0 and sub_mult * H * itemsize > target:
            tile_h = min(H, _floor_to_multiple(target // (sub_mult * itemsize), 128))
        else:
            tile_h = H
        # TODO(synk): if H % 128 != 0 AND sub_mult*H*itemsize > target, this block can still
        # exceed the VMEM budget; a wrapper-side lane-pad/fold of H would fix the budget and
        # the masked vst.msk stores in one go.

        # Time (sublane) tiling.
        row_bytes = tile_h * itemsize
        tile_t = target // max(1, row_bytes)
        tile_t = T if tile_t >= T else min(_floor_to_multiple(tile_t, sub_mult), T)

        # Batch tiling: pack several batch rows per block when a full (T, H) slab is tiny,
        # so per-grid-step overhead (~0.35 us) doesn't dominate.
        if tile_t == T and tile_h == H:
            tile_b = max(1, min(B, target // max(1, T * H * itemsize)))
        else:
            tile_b = 1

        # Guarantee enough parallel blocks for v7x's two TensorCores.
        nt = pl.cdiv(T, tile_t)
        nh = pl.cdiv(H, tile_h)
        tile_b = _cap_tile_for_blocks(tile_b, B, 1, pl.cdiv(_MIN_GRID_BLOCKS, nt * nh))
        nb = pl.cdiv(B, tile_b)
        tile_t = _cap_tile_for_blocks(tile_t, T, sub_mult, pl.cdiv(_MIN_GRID_BLOCKS, nb * nh))
        nt = pl.cdiv(T, tile_t)

        grid = (nb, nt, nh)
        x_block, m_block = (tile_b, tile_t, tile_h), (tile_b, 1, tile_h)
        x_index = lambda b, t, h: (b, t, h)
        m_index = lambda b, t, h: (b, 0, h)
        dim_sem = ("parallel", "parallel", "parallel")
        x_in = x
        out_shape = jax.ShapeDtypeStruct(x.shape, x.dtype)
    else:
        T, B, H = x.shape
        keep = jax.random.bernoulli(key, p=keep_prob, shape=(1, B, H))
        mask = jnp.where(keep, 1.0 / keep_prob, 0.0).astype(x.dtype)

        if B % 8 != 0:
            # Small / unaligned batch: fold (B, H) -> C so the trailing dims stay lane-dense
            # (full (8,128) occupancy, contiguous DMAs, unmasked vector stores).
            C = B * H
            x_in = x.reshape(T, C)
            mask = mask.reshape(1, C)
            tile_t = target // max(1, C * itemsize)
            tile_t = T if tile_t >= T else min(_floor_to_multiple(tile_t, sub_mult), T)
            tile_t = _cap_tile_for_blocks(tile_t, T, sub_mult, _MIN_GRID_BLOCKS)
            grid = (pl.cdiv(T, tile_t),)
            x_block, m_block = (tile_t, C), (1, C)
            x_index = lambda t: (t, 0)
            m_index = lambda t: (0, 0)
            dim_sem = ("parallel",)
            out_shape = jax.ShapeDtypeStruct((T, C), x.dtype)
            reshape_out = (T, B, H)
        else:
            # Sublane-aligned B: keep the 3-D layout, tile the leading time axis.
            tile_t = max(1, min(T, target // max(1, B * H * itemsize)))
            tile_t = _cap_tile_for_blocks(tile_t, T, 1, _MIN_GRID_BLOCKS)
            grid = (pl.cdiv(T, tile_t),)
            x_block, m_block = (tile_t, B, H), (1, B, H)
            x_index = lambda t: (t, 0, 0)
            m_index = lambda t: (0, 0, 0)
            dim_sem = ("parallel",)
            x_in = x
            out_shape = jax.ShapeDtypeStruct(x.shape, x.dtype)

    x_block_bytes = itemsize
    for d in x_block:
        x_block_bytes *= d
    m_block_bytes = itemsize
    for d in m_block:
        m_block_bytes *= d
    # Double-buffered input + output + mask, plus headroom.  Explicit so v5e's 16 MiB default
    # scoped limit never bites; capped at v7x's 64 MiB physical per-TC VMEM.
    vmem_limit = int(min(max(4 * x_block_bytes + 2 * m_block_bytes + (2 << 20), 8 << 20),
                         64 << 20))

    out = pl.pallas_call(
        _mul_kernel,
        out_shape=out_shape,
        grid=grid,
        in_specs=[pl.BlockSpec(x_block, x_index), pl.BlockSpec(m_block, m_index)],
        out_specs=pl.BlockSpec(x_block, x_index),
        compiler_params=pltpu.CompilerParams(
            dimension_semantics=dim_sem, vmem_limit_bytes=vmem_limit),
        input_output_aliases=({0: 0} if donate else {}),
    )(x_in, mask)

    if reshape_out is not None:
        out = out.reshape(reshape_out)
    return out


if __name__ == "__main__":
    key = jax.random.PRNGKey(0)
    dropout = 0.25
    scale = 1.0 / (1.0 - dropout)

    # --- batch_first=True: x is (B, T, H) ---
    B, T, H = 2, 8, 128
    x = jax.random.normal(key, (B, T, H), dtype=jnp.float32)
    y = jax.block_until_ready(
        variational_dropout(x, dropout=dropout, batch_first=True, training=True, seed=1234))
    is_zero = (y == 0.0)
    is_scaled = jnp.isclose(y, x * scale, rtol=1e-6, atol=1e-6)
    assert bool(jnp.all(is_zero | is_scaled)), "values are not in {0, x/(1-p)}"
    m = jnp.where(is_zero, 0.0, 1.0)
    assert bool(jnp.all(m == m[:, :1, :])), "mask differs across time steps"

    # --- batch_first=False: x is (T, B, H), small B -> lane-dense folded (T, B*H) path ---
    x_tf = jnp.swapaxes(x, 0, 1)
    y_tf = jax.block_until_ready(
        variational_dropout(x_tf, dropout=dropout, batch_first=False, training=True, seed=5678))
    is_zero_tf = (y_tf == 0.0)
    is_scaled_tf = jnp.isclose(y_tf, x_tf * scale, rtol=1e-6, atol=1e-6)
    assert bool(jnp.all(is_zero_tf | is_scaled_tf)), "values are not in {0, x/(1-p)} (seq-first)"
    m_tf = jnp.where(is_zero_tf, 0.0, 1.0)
    assert bool(jnp.all(m_tf == m_tf[:1])), "mask differs across time steps (seq-first)"

    # --- batch_first=False with sublane-aligned B (3-D path) ---
    x8 = jax.random.normal(jax.random.PRNGKey(1), (8, 8, 128), dtype=jnp.float32)
    y8 = jax.block_until_ready(
        variational_dropout(x8, dropout=dropout, batch_first=False, training=True, seed=7))
    m8 = jnp.where(y8 == 0.0, 0.0, 1.0)
    assert bool(jnp.all(m8 == m8[:1])), "mask differs across time steps (aligned seq-first)"

    # --- bf16 + non-128 hidden still compiles & runs (masked-store path) ---
    xb = jax.random.normal(jax.random.PRNGKey(2), (2, 8, 96), dtype=jnp.bfloat16)
    yb = jax.block_until_ready(
        variational_dropout(xb, dropout=dropout, batch_first=True, training=True, seed=3))
    assert yb.shape == xb.shape and yb.dtype == xb.dtype

    # --- eval mode / zero dropout are identity ---
    assert bool(jnp.all(
        variational_dropout(x, dropout=dropout, batch_first=True, training=False) == x))
    assert bool(jnp.all(
        variational_dropout(x, dropout=0.0, batch_first=True, training=True) == x))

    print("KERNEL_OK")
</pallas_src>

<mosaic_0001>
module attributes {stable_mosaic.version = 11 : i64} {
  func.func @_mul_kernel(%arg0: i32, %arg1: i32, %arg2: i32, %arg3: memref<1x8x128xf32, #tpu.memory_space<vmem>>, %arg4: memref<1x1x128xf32, #tpu.memory_space<vmem>>, %arg5: memref<1x8x128xf32, #tpu.memory_space<vmem>>) attributes {dimension_semantics = [#tpu.dimension_semantics<parallel>, #tpu.dimension_semantics<parallel>, #tpu.dimension_semantics<parallel>], iteration_bounds = array<i64: 2, 1, 1>, scalar_prefetch = 0 : i64, scratch_operands = 0 : i64, tpu.core_type = #tpu.core_type<tc>, window_params = [{transform_indices = @transform_0, window_bounds = array<i64: 1, 8, 128>}, {transform_indices = @transform_1, window_bounds = array<i64: 1, 1, 128>}, {transform_indices = @transform_2, window_bounds = array<i64: 1, 8, 128>}]} {
    %c0 = arith.constant 0 : index
    %c0_0 = arith.constant 0 : index
    %c0_1 = arith.constant 0 : index
    %0 = vector.load %arg3[%c0, %c0_0, %c0_1] : memref<1x8x128xf32, #tpu.memory_space<vmem>>, vector<1x8x128xf32>
    %c0_2 = arith.constant 0 : index
    %c0_3 = arith.constant 0 : index
    %c0_4 = arith.constant 0 : index
    %1 = vector.load %arg4[%c0_2, %c0_3, %c0_4] : memref<1x1x128xf32, #tpu.memory_space<vmem>>, vector<1x1x128xf32>
    %2 = vector.broadcast %1 : vector<1x1x128xf32> to vector<1x8x128xf32>
    %3 = arith.mulf %0, %2 : vector<1x8x128xf32>
    %c0_5 = arith.constant 0 : index
    %c0_6 = arith.constant 0 : index
    %c0_7 = arith.constant 0 : index
    %4 = vector.load %arg5[%c0_5, %c0_6, %c0_7] : memref<1x8x128xf32, #tpu.memory_space<vmem>>, vector<1x8x128xf32>
    tpu.vector_store %arg5[%c0_5, %c0_6, %c0_7], %3 {strides = array<i32>} : memref<1x8x128xf32, #tpu.memory_space<vmem>>, vector<1x8x128xf32>,
    return
  }
  func.func @transform_0(%arg0: i32, %arg1: i32, %arg2: i32) -> (i32, i32, i32) {
    %c0_i32 = arith.constant 0 : i32
    return %arg0, %arg1, %arg2 : i32, i32, i32
  }
  func.func @transform_1(%arg0: i32, %arg1: i32, %arg2: i32) -> (i32, i32, i32) {
    %c0_i32 = arith.constant 0 : i32
    %c0_i32_0 = arith.constant 0 : i32
    return %arg0, %c0_i32, %arg2 : i32, i32, i32
  }
  func.func @transform_2(%arg0: i32, %arg1: i32, %arg2: i32) -> (i32, i32, i32) {
    %c0_i32 = arith.constant 0 : i32
    return %arg0, %arg1, %arg2 : i32, i32, i32
  }
}

</mosaic_0001>

<llo_original>
// kernel: tpu_custom_call.1
$region0: #{tpu_custom_call.1}
  #allocation0 [shape = 'u32[]', space=smem, size = 0x4, offset = 0x4, fixed_abs, tag = 'smem constant byte address 0x4 - core index']
  #allocation1 [shape = 'u32[144,128]{1,0:T(1,128)}', space=vmem, size = 0x12000, scoped, tag = 'internal scratch']
  %s0 = inlined_call_operand.hbm [shape: f32[2,8,128], index: 0, kind: input, shape index: {}]
  %s1 = inlined_call_operand.vmem [shape: f32[2,1,128], index: 1, kind: input, shape index: {}]
  %s2 = inlined_call_operand.hbm [shape: f32[2,8,128], index: 2, kind: output, shape index: {}]
  %s3 = sld [smem:[#allocation0]]
  $region45: #{tpu_custom_call.1} parent=0
    _
  %s5 = ssub.s32 1, %s3
  %s6 = scalar_select 0, %s5, %s3
  $region1: #{tpu_custom_call.1} parent=0
    #allocation2 [shape = 'u8[8192]{0}', space=vmem, size = 0x2000, scoped, tag = 'input window, operand 0']
    #allocation3 [shape = 's32[2]{0}', space=sflag, size = 0x8, scoped, tag = 'scoped memory for tpu_custom_call.1']
    #allocation4 [shape = 's32[2]{0}', space=sflag, size = 0x8, scoped, tag = 'scoped memory for tpu_custom_call.1']
    #allocation5 [shape = 'u8[8192]{0}', space=vmem, size = 0x2000, scoped, tag = 'output window, operand 0']
    %7 = vsyncpa [#allocation3], 0
    %s8 = scalar_lea.sflag [#allocation3], 1
    %9 = vsyncpa %s8, 0
    %10 = vsyncpa [#allocation4], 0
    %s11 = scalar_lea.sflag [#allocation4], 1
    %12 = vsyncpa %s11, 0
    loop: start=0, step=1, limit=4
    $region2: #{tpu_custom_call.1} parent=1 // loop_pre_header
      _
    $region3: #{tpu_custom_call.1} parent=1 // loop_header
      %s14 = sphi 0, %s18
      %p15 = scmp.ge.s32.totalorder %s14, 4
      %s21 = sphi 0, %s40
      %s22 = sphi 0, %s36
      %s23 = sphi 0, %s32
      %s24 = sphi 0, %s21
      %s25 = sphi 0, %s22
      %s26 = sphi 0, %s23
      %s27 = sphi 0, %s24
      %s28 = sphi 0, %s25
      %s29 = sphi 0, %s26
      %s47 = sphi 0, %s49
      %s50 = sphi 0, %s47
      %s51 = sphi 0, %s50
      %s67 = sphi 0, %s51
      %s75 = sphi 0, %s77
      %s78 = sphi 0, %s75
      %s79 = sphi 0, %s78
      %s95 = sphi 0, %s79
      %s105 = sphi 0, %s107
      %s108 = sphi 0, %s105
      %s109 = sphi 0, %s108
      %s125 = sphi 0, %s109
    $region4: #{tpu_custom_call.1} parent=1 // loop_header_branch
      %17 = sbr.rel (%p15) target = $region8
    $region5: #{tpu_custom_call.1} parent=1 // loop_body
      %s19 = ssub.s32 %s14, 1
      %s20 = ssub.s32 %s14, 2
      %s30 = sadd.s32 1, %s23
      %p31 = scmp.ge.s32.totalorder %s30, 1
      %s32 = scalar_select %p31, 0, %s30
      %s33 = sadd.s32 1, %s22
      %s34 = scalar_select %p31, %s33, %s22
      %p35 = scmp.ge.s32.totalorder %s34, 1
      %s36 = scalar_select %p35, 0, %s34
      %s37 = sadd.s32 1, %s21
      %s38 = scalar_select %p35, %s37, %s21
      %p39 = scmp.ge.s32.totalorder %s38, 2
      %s40 = scalar_select %p39, 0, %s38
      %s41 = ssub.s32 %s21, %s40
      %s42 = ssub.s32 %s22, %s36
      %s43 = sor.u32 %s41, %s42
      %s44 = ssub.s32 %s23, %s32
      %s45 = sor.u32 %s43, %s44
      %p46 = scmp.eq.s32.totalorder %s45, 0
      %s48 = sadd.s32 %s47, 1
      %s49 = scalar_select %p46, %s47, %s48
      %p52 = pneg %p46
      %p53 = scmp.eq.s32.totalorder %s14, 1
      %p54 = por %p52, %p53
      %p55 = scmp.ne.s32.totalorder %s47, %s50
      %p56 = scmp.eq.s32.totalorder %s14, 0
      %p57 = por %p55, %p56
      %p58 = scmp.ne.s32.totalorder %s47, %s50
      %p59 = scmp.eq.s32.totalorder %s19, 1
      %p60 = por %p58, %p59
      %p61 = scmp.ne.s32.totalorder %s50, %s51
      %p62 = scmp.eq.s32.totalorder %s19, 0
      %p63 = por %p61, %p62
      %p64 = scmp.ne.s32.totalorder %s50, %s51
      %p65 = scmp.eq.s32.totalorder %s20, 1
      %p66 = por %p64, %p65
      %p68 = scmp.ne.s32.totalorder %s51, %s67
      %p69 = scmp.eq.s32.totalorder %s20, 0
      %p70 = por %p68, %p69
      %s71 = ssub.s32 %s21, %s40
      %s72 = ssub.s32 %s23, %s32
      %s73 = sor.u32 %s71, %s72
      %p74 = scmp.eq.s32.totalorder %s73, 0
      %s76 = sadd.s32 %s75, 1
      %s77 = scalar_select %p74, %s75, %s76
      %p80 = pneg %p74
      %p81 = scmp.eq.s32.totalorder %s14, 1
      %p82 = por %p80, %p81
      %p83 = scmp.ne.s32.totalorder %s75, %s78
      %p84 = scmp.eq.s32.totalorder %s14, 0
      %p85 = por %p83, %p84
      %p86 = scmp.ne.s32.totalorder %s75, %s78
      %p87 = scmp.eq.s32.totalorder %s19, 1
      %p88 = por %p86, %p87
      %p89 = scmp.ne.s32.totalorder %s78, %s79
      %p90 = scmp.eq.s32.totalorder %s19, 0
      %p91 = por %p89, %p90
      %p92 = scmp.ne.s32.totalorder %s78, %s79
      %p93 = scmp.eq.s32.totalorder %s20, 1
      %p94 = por %p92, %p93
      %p96 = scmp.ne.s32.totalorder %s79, %s95
      %p97 = scmp.eq.s32.totalorder %s20, 0
      %p98 = por %p96, %p97
      %s99 = ssub.s32 %s21, %s40
      %s100 = ssub.s32 %s22, %s36
      %s101 = sor.u32 %s99, %s100
      %s102 = ssub.s32 %s23, %s32
      %s103 = sor.u32 %s101, %s102
      %p104 = scmp.eq.s32.totalorder %s103, 0
      %s106 = sadd.s32 %s105, 1
      %s107 = scalar_select %p104, %s105, %s106
      %p110 = pneg %p104
      %p111 = scmp.eq.s32.totalorder %s14, 1
      %p112 = por %p110, %p111
      %p113 = scmp.ne.s32.totalorder %s105, %s108
      %p114 = scmp.eq.s32.totalorder %s14, 0
      %p115 = por %p113, %p114
      %p116 = scmp.ne.s32.totalorder %s105, %s108
      %p117 = scmp.eq.s32.totalorder %s19, 1
      %p118 = por %p116, %p117
      %p119 = scmp.ne.s32.totalorder %s108, %s109
      %p120 = scmp.eq.s32.totalorder %s19, 0
      %p121 = por %p119, %p120
      %p122 = scmp.ne.s32.totalorder %s108, %s109
      %p123 = scmp.eq.s32.totalorder %s20, 1
      %p124 = por %p122, %p123
      %p126 = scmp.ne.s32.totalorder %s109, %s125
      %p127 = scmp.eq.s32.totalorder %s20, 0
      %p128 = por %p126, %p127
      %p129 = scmp.le.s32.totalorder 1, %s14
      %p130 = scmp.lt.s32.totalorder %s14, 3
      %p131 = pnand %p129, %p130
      %p132 = pneg %p131
      // Predicated region
      $region9: #{tpu_custom_call.1} parent=5 // pred_check
        _
      $region10: #{tpu_custom_call.1} parent=5 // pred_check_branch
        %134 = sbr.rel (%p131) target = $region12
      $region11: #{tpu_custom_call.1} parent=5 // pred_region
        %s135 = ssub.s32 %s14, 1
      $region12: #{tpu_custom_call.1} parent=5 // pred_fallthru
        _
      %p136 = scmp.lt.s32.totalorder %s14, 2
      // Predicated region
      $region13: #{tpu_custom_call.1} parent=5 // pred_check
        %p137 = pneg %p136
      $region14: #{tpu_custom_call.1} parent=5 // pred_check_branch
        %139 = sbr.rel (%p137) target = $region16
      $region15: #{tpu_custom_call.1} parent=5 // pred_region
        // Predicated region
        $region17: #{tpu_custom_call.1} parent=15 // pred_check
          %p140 = pneg %p57
        $region18: #{tpu_custom_call.1} parent=15 // pred_check_branch
          %142 = sbr.rel (%p140) target = $region20
        $region19: #{tpu_custom_call.1} parent=15 // pred_region
          %s143 = sand.u32 %s47, 1
          %s144 = scalar_lea.sflag [#allocation3], %s143
          %s145 = sand.u32 %s47, 1
          %s146 = smul.addr %s145, 8
          %s147 = scalar_lea.vmem [#allocation2], %s146
          %s149 = ssub.s32 128, 128
          %150 = vsyncadd %s144, %s149
          %s151 = sadd.s32 %s23, %s22
          %s152 = sadd.s32 %s151, %s21
          %s153 = smul.addr %s152, 128
          %s154 = scalar_lea.hbm %s0, %s153
          %s156 = sshll.u32 %s147, 4
          %s157 = int_to_ptr.vmem [resolvable:$true] %s156
          %159 = dma.hbm_to_vmem [thread:$0]  %s154, 128, %s157, %s144
        $region20: #{tpu_custom_call.1} parent=15 // pred_fallthru
          _
        // Predicated region
        $region21: #{tpu_custom_call.1} parent=15 // pred_check
          %p160 = pneg %p85
        $region22: #{tpu_custom_call.1} parent=15 // pred_check_branch
          %162 = sbr.rel (%p160) target = $region24
        $region23: #{tpu_custom_call.1} parent=15 // pred_region
          %p163 = scmp.lt.s32.totalorder %s21, 1
          %s164 = scalar_select %p163, %s21, 1
          %p165 = scmp.lt.s32.totalorder %s23, 0
          %s166 = scalar_select %p165, %s23, 0
          %s167 = sadd.s32 %s166, %s164
          %s168 = scalar_lea.vmem %s1, %s167
        $region24: #{tpu_custom_call.1} parent=15 // pred_fallthru
          _
      $region16: #{tpu_custom_call.1} parent=5 // pred_fallthru
        _
      %p169 = scmp.le.s32.totalorder 1, %s14
      %p170 = scmp.lt.s32.totalorder %s14, 3
      %p171 = pnand %p169, %p170
      %p172 = pneg %p171
      // Predicated region
      $region25: #{tpu_custom_call.1} parent=5 // pred_check
        _
      $region26: #{tpu_custom_call.1} parent=5 // pred_check_branch
        %174 = sbr.rel (%p171) target = $region28
      $region27: #{tpu_custom_call.1} parent=5 // pred_region
        %s175 = ssub.s32 %s14, 1
        %s176 = sand.u32 %s50, 1
        %s177 = scalar_lea.sflag [#allocation3], %s176
        %s178 = sand.u32 %s50, 1
        %s179 = smul.addr %s178, 8
        %s180 = scalar_lea.vmem [#allocation2], %s179
        // Predicated region
        $region29: #{tpu_custom_call.1} parent=27 // pred_check
          %p181 = pneg %p63
        $region30: #{tpu_custom_call.1} parent=27 // pred_check_branch
          %183 = sbr.rel (%p181) target = $region32
        $region31: #{tpu_custom_call.1} parent=27 // pred_region
          %184 = dma.done %s177, 128
        $region32: #{tpu_custom_call.1} parent=27 // pred_fallthru
          _
        %s185 = sand.u32 %s50, 1
        %s186 = scalar_lea.sflag [#allocation3], %s185
        %s187 = sand.u32 %s50, 1
        %s188 = smul.addr %s187, 8
        %s189 = scalar_lea.vmem [#allocation2], %s188
        %p190 = pneg %p63
        %p191 = pneg %p60
        %p192 = scmp.lt.s32.totalorder %s24, 1
        %s193 = scalar_select %p192, %s24, 1
        %p194 = scmp.lt.s32.totalorder %s26, 0
        %s195 = scalar_select %p194, %s26, 0
        %s196 = sadd.s32 %s195, %s193
        %s197 = scalar_lea.vmem %s1, %s196
        %p198 = pneg %p91
        %p199 = pneg %p88
        %p200 = pneg %p121
        %p201 = pneg %p118
        %s202 = sand.u32 %s108, 1
        %s203 = scalar_lea.sflag [#allocation4], %s202
        %s204 = sand.u32 %s108, 1
        %s205 = smul.addr %s204, 8
        %s206 = scalar_lea.vmem [#allocation5], %s205
        %p207 = scmp.lt.s32.totalorder %s24, 1
        %s208 = scalar_select %p207, %s24, 1
        %p209 = scmp.lt.s32.totalorder %s26, 0
        %s210 = scalar_select %p209, %s26, 0
        %s211 = sadd.s32 %s210, %s208
        %s212 = scalar_lea.vmem %s1, %s211
        %v213 = vld [vmem:[%s180] sm:$0xff]
        %v214 = vld [vmem:[%s212] sm:$0x1]
        %v216 = vlaneseq
        %v217 = vshrl.u32 %v216, 7
        %v218 = vsub.s32 0, %v217
        %v219 = vrot.slane %v214, %v218
        %v221 = vmul.f32 %v213, %v219
        %222 = vst [vmem:[%s206] sm:$0xff] %v221
        %s223 = sand.u32 %s108, 1
        %s224 = scalar_lea.sflag [#allocation4], %s223
        %s225 = sand.u32 %s108, 1
        %s226 = smul.addr %s225, 8
        %s227 = scalar_lea.vmem [#allocation5], %s226
        // Predicated region
        $region33: #{tpu_custom_call.1} parent=27 // pred_check
          %p228 = pneg %p118
        $region34: #{tpu_custom_call.1} parent=27 // pred_check_branch
          %230 = sbr.rel (%p228) target = $region36
        $region35: #{tpu_custom_call.1} parent=27 // pred_region
          %s232 = ssub.s32 128, 128
          %233 = vsyncadd %s224, %s232
          %s234 = sadd.s32 %s26, %s25
          %s235 = sadd.s32 %s234, %s24
          %s236 = smul.addr %s235, 128
          %s237 = scalar_lea.hbm %s2, %s236
          %s239 = sshll.u32 %s227, 4
          %s240 = int_to_ptr.vmem [resolvable:$true] %s239
          %242 = dma.vmem_to_hbm [thread:$0]  %s240, 128, %s237, %s224
        $region36: #{tpu_custom_call.1} parent=27 // pred_fallthru
          _
      $region28: #{tpu_custom_call.1} parent=5 // pred_fallthru
        _
      %p243 = scmp.le.s32.totalorder 2, %s14
      // Predicated region
      $region37: #{tpu_custom_call.1} parent=5 // pred_check
        %p244 = pneg %p243
      $region38: #{tpu_custom_call.1} parent=5 // pred_check_branch
        %246 = sbr.rel (%p244) target = $region40
      $region39: #{tpu_custom_call.1} parent=5 // pred_region
        %s247 = ssub.s32 %s14, 2
        // Predicated region
        $region41: #{tpu_custom_call.1} parent=39 // pred_check
          %p248 = pneg %p124
        $region42: #{tpu_custom_call.1} parent=39 // pred_check_branch
          %250 = sbr.rel (%p248) target = $region44
        $region43: #{tpu_custom_call.1} parent=39 // pred_region
          %s251 = sand.u32 %s109, 1
          %s252 = scalar_lea.sflag [#allocation4], %s251
          %s253 = sand.u32 %s109, 1
          %s254 = smul.addr %s253, 8
          %s255 = scalar_lea.vmem [#allocation5], %s254
          %256 = dma.done %s252, 128
        $region44: #{tpu_custom_call.1} parent=39 // pred_fallthru
          _
      $region40: #{tpu_custom_call.1} parent=5 // pred_fallthru
        _
    $region6: #{tpu_custom_call.1} parent=1 // loop_footer
      %s18 = sadd.s32 1, %s14
    $region7: #{tpu_custom_call.1} parent=1 // loop_footer_branch
      %13 = sbr.rel target = $region3
    $region8: #{tpu_custom_call.1} parent=1 // loop_exit
      _
    %257 = vsyncpa [#allocation3], 1
    %s258 = scalar_lea.sflag [#allocation3], 1
    %259 = vsyncpa %s258, 1
    %260 = vsyncpa [#allocation4], 1
    %s261 = scalar_lea.sflag [#allocation4], 1
    %262 = vsyncpa %s261, 1

</llo_original>
